<compile_context>
chip_gen: v7x
topology: tpu7x:2x2x1
jax: 0.10.0
libtpu: 0.0.40
codegen_flags: <defaults>
</compile_context>

<pallas_src>
import functools

import jax
import jax.numpy as jnp
from jax.experimental import pallas as pl
from jax.experimental.pallas import tpu as pltpu


def _radar_encoder_kernel(x_ref, w1_ref, b1_ref, w2_ref, b2_ref, o_ref):
    """Fused MLP: Linear -> ReLU -> Linear -> ReLU on one token tile."""
    # Cast activations to the weight dtype (bf16 weights -> bf16 MXU inputs),
    # accumulate in f32 via preferred_element_type.
    x = x_ref[...].astype(w1_ref.dtype)
    # Layer 1: [tile_m, D_in] @ [D_in, H] -> [tile_m, H], f32 accumulation.
    h = jnp.dot(x, w1_ref[...], preferred_element_type=jnp.float32)
    h = jnp.maximum(h + b1_ref[...].astype(jnp.float32), 0.0)
    # Layer 2: [tile_m, H] @ [H, D_out] -> [tile_m, D_out] (D_out=128, lane-dense).
    y = jnp.dot(h.astype(w2_ref.dtype), w2_ref[...],
                preferred_element_type=jnp.float32)
    y = jnp.maximum(y + b2_ref[...].astype(jnp.float32), 0.0)
    o_ref[...] = y.astype(o_ref.dtype)


def _round_up(x, m):
    return ((x + m - 1) // m) * m


def _cdiv(a, b):
    return -(-a // b)


def _num_tensorcores():
    """2 TensorCores per chip on v7x, 1 on v5e/v6e (best-effort detection)."""
    try:
        kind = jax.devices()[0].device_kind.lower()
    except Exception:  # pragma: no cover - defensive; default to 1 core
        return 1
    return 2 if "v7" in kind else 1


def _pick_tile_m(M, *, cap=2048, num_cores=1):
    """Token-tile size: big tiles to amortize ~0.35us/step; gen-aware grid.

    v5e/v6e (1 TC): a single grid step for small/medium M (no megacore to
    feed, extra steps are pure overhead). v7x (2 TC): target >=4 steps, an
    even number, so each core keeps DMA/compute overlap while both cores share
    the HBM stream.
    """
    M_pad = _round_up(max(M, 1), 8)
    min_steps = 1 if num_cores == 1 else 4
    target_steps = max(min_steps, _cdiv(M_pad, cap))
    if num_cores > 1 and target_steps % 2:
        target_steps += 1  # even split across the two v7x TensorCores
    tile_m = _round_up(_cdiv(M_pad, target_steps), 8)
    return max(8, min(tile_m, cap))


@functools.partial(jax.jit, static_argnames=("tile_m", "out_dtype"))
def radar_encoder_forward(radar, params, *, tile_m=None, out_dtype=None):
    """Pallas implementation of RadarEncoder.forward.

    radar:  [..., input_dim] (e.g. [B, N, 6])
    params: dict with keys w1 [D_in, H], b1 [1, H], w2 [H, D_out], b2 [1, D_out]
            (weights stored [in, out], i.e. transposed vs torch.nn.Linear.weight).
    out_dtype: output dtype; pass jnp.bfloat16 when the downstream trunk runs
            in bf16 to halve the dominant HBM output-write traffic.
    Returns embeddings with shape [..., D_out].
    """
    lead = radar.shape[:-1]
    D_in = radar.shape[-1]
    M = 1
    for d in lead:
        M *= d
    x = radar.reshape(M, D_in)

    H = params["w1"].shape[1]
    D_out = params["w2"].shape[1]
    out_dtype = radar.dtype if out_dtype is None else out_dtype

    if tile_m is None:
        tile_m = _pick_tile_m(M, num_cores=_num_tensorcores())

    grid = (_cdiv(M, tile_m),)

    def tok_map(i):
        return (i, 0)

    def full_map(i):
        return (0, 0)

    in_specs = [
        pl.BlockSpec((tile_m, D_in), tok_map),   # x tile (pipelined over grid)
        pl.BlockSpec((D_in, H), full_map),       # w1 (resident, constant index)
        pl.BlockSpec((1, H), full_map),          # b1
        pl.BlockSpec((H, D_out), full_map),      # w2 (resident, constant index)
        pl.BlockSpec((1, D_out), full_map),      # b2
    ]
    out_specs = pl.BlockSpec((tile_m, D_out), tok_map)

    # Advisory cost hint with per-operand dtypes so XLA can schedule this tiny
    # custom call against the surrounding graph.
    in_b = jnp.dtype(radar.dtype).itemsize
    w1_b = jnp.dtype(params["w1"].dtype).itemsize
    w2_b = jnp.dtype(params["w2"].dtype).itemsize
    out_b = jnp.dtype(out_dtype).itemsize
    cost = pl.CostEstimate(
        flops=2 * M * D_in * H + 2 * M * H * D_out,
        transcendentals=0,
        bytes_accessed=(M * D_in * in_b
                        + M * D_out * out_b
                        + (D_in * H + H) * w1_b
                        + (H * D_out + D_out) * w2_b),
    )

    out_flat = pl.pallas_call(
        _radar_encoder_kernel,
        out_shape=jax.ShapeDtypeStruct((M, D_out), out_dtype),
        grid_spec=pltpu.PrefetchScalarGridSpec(
            num_scalar_prefetch=0,
            grid=grid,
            in_specs=in_specs,
            out_specs=out_specs,
        ),
        compiler_params=pltpu.CompilerParams(
            dimension_semantics=("parallel",),
        ),
        cost_estimate=cost,
    )(x, params["w1"], params["b1"], params["w2"], params["b2"])

    return out_flat.reshape(*lead, D_out)


def init_params(key, input_dim=6, embed_dim=128, hidden=64, dtype=jnp.float32):
    """Deterministic synthetic init mirroring nn.Linear shapes.

    Weights stored as [in, out] (transposed vs torch's [out, in]).
    """
    keys = jax.random.split(key, 4)

    def u(k, shape, fan_in):
        bound = 1.0 / jnp.sqrt(fan_in)
        return jax.random.uniform(k, shape, jnp.float32, -bound, bound).astype(dtype)

    return {
        "w1": u(keys[0], (input_dim, hidden), input_dim),
        "b1": u(keys[1], (1, hidden), input_dim),
        "w2": u(keys[2], (hidden, embed_dim), hidden),
        "b2": u(keys[3], (1, embed_dim), hidden),
    }


def _reference_forward(radar, params):
    """Pure-JAX f32 reference for correctness checking."""
    w1 = params["w1"].astype(jnp.float32)
    b1 = params["b1"].astype(jnp.float32)
    w2 = params["w2"].astype(jnp.float32)
    b2 = params["b2"].astype(jnp.float32)
    h = jnp.maximum(radar.astype(jnp.float32) @ w1 + b1[0], 0.0)
    return jnp.maximum(h @ w2 + b2[0], 0.0)


if __name__ == "__main__":
    key = jax.random.PRNGKey(0)
    k_rad, k_par = jax.random.split(key)

    B, N, input_dim, embed_dim = 2, 8, 6, 128
    radar = jax.random.normal(k_rad, (B, N, input_dim), dtype=jnp.float32)
    params = init_params(k_par, input_dim=input_dim, embed_dim=embed_dim,
                         dtype=jnp.float32)
    ref = _reference_forward(radar, params)

    # f32 path: matches the PyTorch module bit-for-bit up to f32 matmul order.
    out = jax.block_until_ready(radar_encoder_forward(radar, params))
    assert out.shape == (B, N, embed_dim)
    assert out.dtype == radar.dtype
    assert jnp.allclose(out, ref, atol=1e-5, rtol=1e-5)

    # bf16 fast path (bf16 weights + bf16 output): the HBM-write-bound config
    # recommended by the perf review when the RGViT trunk runs in bf16.
    params_bf16 = jax.tree_util.tree_map(
        lambda p: p.astype(jnp.bfloat16), params)
    out_bf16 = jax.block_until_ready(
        radar_encoder_forward(radar, params_bf16, out_dtype=jnp.bfloat16))
    assert out_bf16.shape == (B, N, embed_dim)
    assert out_bf16.dtype == jnp.bfloat16
    assert jnp.allclose(out_bf16.astype(jnp.float32), ref, atol=5e-2, rtol=5e-2)

    print("KERNEL_OK")
</pallas_src>

<mosaic_0001>
module attributes {stable_mosaic.version = 11 : i64} {
  func.func @_radar_encoder_kernel(%arg0: i32, %arg1: memref<16x6xf32, #tpu.memory_space<vmem>>, %arg2: memref<6x64xf32, #tpu.memory_space<vmem>>, %arg3: memref<1x64xf32, #tpu.memory_space<vmem>>, %arg4: memref<64x128xf32, #tpu.memory_space<vmem>>, %arg5: memref<1x128xf32, #tpu.memory_space<vmem>>, %arg6: memref<16x128xf32, #tpu.memory_space<vmem>>) attributes {dimension_semantics = [#tpu.dimension_semantics<parallel>], iteration_bounds = array<i64: 1>, scalar_prefetch = 0 : i64, scratch_operands = 0 : i64, tpu.core_type = #tpu.core_type<tc>, window_params = [{transform_indices = @transform_0, window_bounds = array<i64: 16, 6>}, {pipeline_mode = #tpu.pipeline_mode<synchronous>, transform_indices = @transform_1, window_bounds = array<i64: 6, 64>}, {pipeline_mode = #tpu.pipeline_mode<synchronous>, transform_indices = @transform_2, window_bounds = array<i64: 1, 64>}, {pipeline_mode = #tpu.pipeline_mode<synchronous>, transform_indices = @transform_3, window_bounds = array<i64: 64, 128>}, {pipeline_mode = #tpu.pipeline_mode<synchronous>, transform_indices = @transform_4, window_bounds = array<i64: 1, 128>}, {transform_indices = @transform_5, window_bounds = array<i64: 16, 128>}]} {
    %c0 = arith.constant 0 : index
    %c0_0 = arith.constant 0 : index
    %0 = vector.load %arg1[%c0, %c0_0] : memref<16x6xf32, #tpu.memory_space<vmem>>, vector<16x6xf32>
    %c0_1 = arith.constant 0 : index
    %c0_2 = arith.constant 0 : index
    %1 = vector.load %arg2[%c0_1, %c0_2] : memref<6x64xf32, #tpu.memory_space<vmem>>, vector<6x64xf32>
    %cst = arith.constant dense<0.000000e+00> : vector<16x64xf32>
    %2 = tpu.matmul %0, %1, %cst {dimension_numbers = #tpu.dot_dimension_numbers<[1], [0], [0], [1], [0, 0, 1, 1], [], []>} : vector<16x6xf32>, vector<6x64xf32>, vector<16x64xf32> -> vector<16x64xf32>
    %c0_3 = arith.constant 0 : index
    %c0_4 = arith.constant 0 : index
    %3 = vector.load %arg3[%c0_3, %c0_4] : memref<1x64xf32, #tpu.memory_space<vmem>>, vector<1x64xf32>
    %4 = vector.broadcast %3 : vector<1x64xf32> to vector<16x64xf32>
    %5 = arith.addf %2, %4 : vector<16x64xf32>
    %cst_5 = arith.constant 0.000000e+00 : f32
    %6 = vector.broadcast %cst_5 : f32 to vector<16x64xf32>
    %7 = arith.maximumf %5, %6 : vector<16x64xf32>
    %c0_6 = arith.constant 0 : index
    %c0_7 = arith.constant 0 : index
    %8 = vector.load %arg4[%c0_6, %c0_7] : memref<64x128xf32, #tpu.memory_space<vmem>>, vector<64x128xf32>
    %cst_8 = arith.constant dense<0.000000e+00> : vector<16x128xf32>
    %9 = tpu.matmul %7, %8, %cst_8 {dimension_numbers = #tpu.dot_dimension_numbers<[1], [0], [0], [1], [0, 0, 1, 1], [], []>} : vector<16x64xf32>, vector<64x128xf32>, vector<16x128xf32> -> vector<16x128xf32>
    %c0_9 = arith.constant 0 : index
    %c0_10 = arith.constant 0 : index
    %10 = vector.load %arg5[%c0_9, %c0_10] : memref<1x128xf32, #tpu.memory_space<vmem>>, vector<1x128xf32>
    %11 = vector.broadcast %10 : vector<1x128xf32> to vector<16x128xf32>
    %12 = arith.addf %9, %11 : vector<16x128xf32>
    %cst_11 = arith.constant 0.000000e+00 : f32
    %13 = vector.broadcast %cst_11 : f32 to vector<16x128xf32>
    %14 = arith.maximumf %12, %13 : vector<16x128xf32>
    %c0_12 = arith.constant 0 : index
    %c0_13 = arith.constant 0 : index
    %15 = vector.load %arg6[%c0_12, %c0_13] : memref<16x128xf32, #tpu.memory_space<vmem>>, vector<16x128xf32>
    tpu.vector_store %arg6[%c0_12, %c0_13], %14 {strides = array<i32>} : memref<16x128xf32, #tpu.memory_space<vmem>>, vector<16x128xf32>,
    return
  }
  func.func @transform_0(%arg0: i32) -> (i32, i32) {
    %c0_i32 = arith.constant 0 : i32
    %c0_i32_0 = arith.constant 0 : i32
    return %arg0, %c0_i32 : i32, i32
  }
  func.func @transform_1(%arg0: i32) -> (i32, i32) {
    %c0_i32 = arith.constant 0 : i32
    %c0_i32_0 = arith.constant 0 : i32
    %c0_i32_1 = arith.constant 0 : i32
    return %c0_i32, %c0_i32_0 : i32, i32
  }
  func.func @transform_2(%arg0: i32) -> (i32, i32) {
    %c0_i32 = arith.constant 0 : i32
    %c0_i32_0 = arith.constant 0 : i32
    %c0_i32_1 = arith.constant 0 : i32
    return %c0_i32, %c0_i32_0 : i32, i32
  }
  func.func @transform_3(%arg0: i32) -> (i32, i32) {
    %c0_i32 = arith.constant 0 : i32
    %c0_i32_0 = arith.constant 0 : i32
    %c0_i32_1 = arith.constant 0 : i32
    return %c0_i32, %c0_i32_0 : i32, i32
  }
  func.func @transform_4(%arg0: i32) -> (i32, i32) {
    %c0_i32 = arith.constant 0 : i32
    %c0_i32_0 = arith.constant 0 : i32
    %c0_i32_1 = arith.constant 0 : i32
    return %c0_i32, %c0_i32_0 : i32, i32
  }
  func.func @transform_5(%arg0: i32) -> (i32, i32) {
    %c0_i32 = arith.constant 0 : i32
    %c0_i32_0 = arith.constant 0 : i32
    return %arg0, %c0_i32 : i32, i32
  }
}

</mosaic_0001>

<llo_original>
// kernel: radar_encoder_forward.1
$region0: #{radar_encoder_forward.1}
  #allocation0 [shape = 'u32[]', space=smem, size = 0x4, offset = 0x4, fixed_abs, tag = 'smem constant byte address 0x4 - core index']
  #allocation1 [shape = 'u32[144,128]{1,0:T(1,128)}', space=vmem, size = 0x12000, scoped, tag = 'internal scratch']
  %s0 = inlined_call_operand.vmem [shape: f32[16,6], index: 0, kind: input, shape index: {}]
  %s1 = inlined_call_operand.vmem [shape: f32[6,64], index: 1, kind: input, shape index: {}]
  %s2 = inlined_call_operand.vmem [shape: f32[1,64], index: 2, kind: input, shape index: {}]
  %s3 = inlined_call_operand.hbm [shape: f32[64,128], index: 3, kind: input, shape index: {}]
  %s4 = inlined_call_operand.vmem [shape: f32[1,128], index: 4, kind: input, shape index: {}]
  %s5 = inlined_call_operand.hbm [shape: f32[16,128], index: 5, kind: output, shape index: {}]
  %s6 = sld [smem:[#allocation0]]
  $region34: #{radar_encoder_forward.1} parent=0
    _
  %s8 = ssub.s32 1, %s6
  %s9 = scalar_select 0, %s8, %s6
  $region1: #{radar_encoder_forward.1} parent=0
    #allocation2 [shape = 'u8[32768]{0}', space=vmem, size = 0x8000, scoped, tag = 'input window, operand 3, single buffered']
    #allocation3 [shape = 's32[1]{0}', space=sflag, size = 0x4, scoped, tag = 'scoped memory for radar_encoder_forward.1']
    #allocation4 [shape = 's32[1]{0}', space=sflag, size = 0x4, scoped, tag = 'scoped memory for radar_encoder_forward.1']
    #allocation5 [shape = 'u8[8192]{0}', space=vmem, size = 0x2000, scoped, tag = 'output window, operand 0, single buffered']
    %10 = vsyncpa [#allocation3], 0
    %11 = vsyncpa [#allocation4], 0
    // Predicated region
    $region2: #{radar_encoder_forward.1} parent=1 // pred_check
      _
    $region3: #{radar_encoder_forward.1} parent=1 // pred_check_branch
      %13 = sbr.rel (0) target = $region5
    $region4: #{radar_encoder_forward.1} parent=1 // pred_region
      _
    $region5: #{radar_encoder_forward.1} parent=1 // pred_fallthru
      _
    // Predicated region
    $region6: #{radar_encoder_forward.1} parent=1 // pred_check
      _
    $region7: #{radar_encoder_forward.1} parent=1 // pred_check_branch
      %15 = sbr.rel (0) target = $region9
    $region8: #{radar_encoder_forward.1} parent=1 // pred_region
      _
    $region9: #{radar_encoder_forward.1} parent=1 // pred_fallthru
      _
    // Predicated region
    $region10: #{radar_encoder_forward.1} parent=1 // pred_check
      _
    $region11: #{radar_encoder_forward.1} parent=1 // pred_check_branch
      %17 = sbr.rel (0) target = $region13
    $region12: #{radar_encoder_forward.1} parent=1 // pred_region
      _
    $region13: #{radar_encoder_forward.1} parent=1 // pred_fallthru
      _
    // Predicated region
    $region14: #{radar_encoder_forward.1} parent=1 // pred_check
      _
    $region15: #{radar_encoder_forward.1} parent=1 // pred_check_branch
      %19 = sbr.rel (0) target = $region17
    $region16: #{radar_encoder_forward.1} parent=1 // pred_region
      %s21 = ssub.s32 1024, 1024
      %22 = vsyncadd [#allocation3], %s21
      %s23 = sshll.u32 [#allocation2], 4
      %s24 = int_to_ptr.vmem [resolvable:$true] %s23
      %29 = dma.hbm_to_vmem [thread:$0]  %s3, 1024, %s24, [#allocation3], 128, 128, 8
    $region17: #{radar_encoder_forward.1} parent=1 // pred_fallthru
      _
    // Predicated region
    $region18: #{radar_encoder_forward.1} parent=1 // pred_check
      _
    $region19: #{radar_encoder_forward.1} parent=1 // pred_check_branch
      %31 = sbr.rel (0) target = $region21
    $region20: #{radar_encoder_forward.1} parent=1 // pred_region
      _
    $region21: #{radar_encoder_forward.1} parent=1 // pred_fallthru
      _
    // Predicated region
    $region22: #{radar_encoder_forward.1} parent=1 // pred_check
      _
    $region23: #{radar_encoder_forward.1} parent=1 // pred_check_branch
      %33 = sbr.rel (0) target = $region25
    $region24: #{radar_encoder_forward.1} parent=1 // pred_region
      %34 = dma.done [#allocation3], 1024
    $region25: #{radar_encoder_forward.1} parent=1 // pred_fallthru
      _
    %v35 = vld [vmem:[%s0] sm:$0xff]
    %v36 = vld [vmem:[%s0 + $0x8] sm:$0xff]
    %v37 = vld [vmem:[%s1] sm:$0x3f]
    %v38 = vld [vmem:[%s2] sm:$0x1]
    %v40 = vlaneseq
    %v41 = vshrl.u32 %v40, 7
    %v42 = vsub.s32 0, %v41
    %v43 = vrot.slane %v38, %v42
    %vm45 = vcmask 48128
    %v47 = vsel %vm45, %v35, 0
    %v50 = vsel %vm45, %v36, 0
    %vm52 = vcmask 1045504
    %v54 = vsel %vm52, %v37, 0
    %56 = vmatprep.subr.mxu0 0.0
    %57 = vmatpush1.msra.mxu0 %v54
    %58 = vmatprep.subr.mxu0 0.0
    %59 = vmatpush1.msra.mxu0 0.0
    %60 = vmatprep.subr.mxu0 0.0
    %61 = vmatpush1.msra.mxu0 0.0
    %62 = vmatprep.subr.mxu0 0.0
    %63 = vmatpush1.msra.mxu0 0.0
    %64 = vmatprep.subr.mxu0 0.0
    %65 = vmatpush1.msra.mxu0 0.0
    %66 = vmatprep.subr.mxu0 0.0
    %67 = vmatpush1.msra.mxu0 0.0
    %68 = vmatprep.subr.mxu0 0.0
    %69 = vmatpush1.msra.mxu0 0.0
    %70 = vmatprep.subr.mxu0 0.0
    %71 = vmatpush1.msra.mxu0 0.0
    %72 = vmatprep.subr.mxu0 0.0
    %73 = vmatpush1.msra.mxu0 0.0
    %74 = vmatprep.subr.mxu0 0.0
    %75 = vmatpush1.msra.mxu0 0.0
    %76 = vmatprep.subr.mxu0 0.0
    %77 = vmatpush1.msra.mxu0 0.0
    %78 = vmatprep.subr.mxu0 0.0
    %79 = vmatpush1.msra.mxu0 0.0
    %80 = vmatprep.subr.mxu0 0.0
    %81 = vmatpush1.msra.mxu0 0.0
    %82 = vmatprep.subr.mxu0 0.0
    %83 = vmatpush1.msra.mxu0 0.0
    %84 = vmatprep.subr.mxu0 0.0
    %85 = vmatpush1.msra.mxu0 0.0
    %86 = vmatprep.subr.mxu0 0.0
    %87 = vmatpush1.msra.mxu0 0.0
    %88 = vmatprep.subr.mxu0 0.0
    %89 = vmatpush1.msra.mxu0 0.0
    %90 = vmatprep.subr.mxu0 0.0
    %91 = vmatpush1.msra.mxu0 0.0
    %92 = vmatprep.subr.mxu0 0.0
    %93 = vmatpush1.msra.mxu0 0.0
    %94 = vmatprep.subr.mxu0 0.0
    %95 = vmatpush1.msra.mxu0 0.0
    %96 = vmatprep.subr.mxu0 0.0
    %97 = vmatpush1.msra.mxu0 0.0
    %98 = vmatprep.subr.mxu0 0.0
    %99 = vmatpush1.msra.mxu0 0.0
    %100 = vmatprep.subr.mxu0 0.0
    %101 = vmatpush1.msra.mxu0 0.0
    %102 = vmatprep.subr.mxu0 0.0
    %103 = vmatpush1.msra.mxu0 0.0
    %104 = vmatprep.subr.mxu0 0.0
    %105 = vmatpush1.msra.mxu0 0.0
    %106 = vmatprep.subr.mxu0 0.0
    %107 = vmatpush1.msra.mxu0 0.0
    %108 = vmatprep.subr.mxu0 0.0
    %109 = vmatpush1.msra.mxu0 0.0
    %110 = vmatprep.subr.mxu0 0.0
    %111 = vmatpush1.msra.mxu0 0.0
    %112 = vmatprep.subr.mxu0 0.0
    %113 = vmatpush1.msra.mxu0 0.0
    %114 = vmatprep.subr.mxu0 0.0
    %115 = vmatpush1.msra.mxu0 0.0
    %116 = vmatprep.subr.mxu0 0.0
    %117 = vmatpush1.msra.mxu0 0.0
    %118 = vmatprep.subr.mxu0 0.0
    %119 = vmatpush1.msra.mxu0 0.0
    %120 = vmatprep.mubr.f32.mxu0 0.0
    %121 = vmatmul.mubr.f32.gmra.mrb[0].mxu0 %v47
    %v122 = vpop.f32.mrb[0].mxu0
    %v123 = vadd.f32 %v43, %v122
    %v124 = vpop.f32.mrb[0].mxu0
    %125 = vmatprep.mubr.f32.mxu0 0.0
    %126 = vmatmul.mubr.f32.gmra.mrb[0].mxu0 %v50
    %v127 = vpop.f32.mrb[0].mxu0
    %v128 = vadd.f32 %v43, %v127
    %v129 = vpop.f32.mrb[0].mxu0
    %130 = vdwg.mxu0
    %v131 = vmax.f32 %v123, 0.0
    %v132 = vmax.f32 %v128, 0.0
    %v133 = vld [vmem:[#allocation2] sm:$0xff]
    %v134 = vld [vmem:[#allocation2 + $0x8] sm:$0xff]
    %v135 = vld [vmem:[#allocation2 + $0x10] sm:$0xff]
    %v136 = vld [vmem:[#allocation2 + $0x18] sm:$0xff]
    %v137 = vld [vmem:[#allocation2 + $0x20] sm:$0xff]
    %v138 = vld [vmem:[#allocation2 + $0x28] sm:$0xff]
    %v139 = vld [vmem:[#allocation2 + $0x30] sm:$0xff]
    %v140 = vld [vmem:[#allocation2 + $0x38] sm:$0xff]
    %v141 = vld [vmem:[%s4] sm:$0x1]
    %v143 = vlaneseq
    %v144 = vshrl.u32 %v143, 7
    %v145 = vsub.s32 0, %v144
    %v146 = vrot.slane %v141, %v145
    %vm148 = vcmask 523264
    %v150 = vsel %vm148, %v131, 0
    %v153 = vsel %vm148, %v132, 0
    %155 = vmatprep.subr.mxu0 0.0
    %156 = vmatpush1.msra.mxu0 %v133
    %157 = vmatprep.subr.mxu0 0.0
    %158 = vmatpush1.msra.mxu0 %v134
    %159 = vmatprep.subr.mxu0 0.0
    %160 = vmatpush1.msra.mxu0 %v135
    %161 = vmatprep.subr.mxu0 0.0
    %162 = vmatpush1.msra.mxu0 %v136
    %163 = vmatprep.subr.mxu0 0.0
    %164 = vmatpush1.msra.mxu0 %v137
    %165 = vmatprep.subr.mxu0 0.0
    %166 = vmatpush1.msra.mxu0 %v138
    %167 = vmatprep.subr.mxu0 0.0
    %168 = vmatpush1.msra.mxu0 %v139
    %169 = vmatprep.subr.mxu0 0.0
    %170 = vmatpush1.msra.mxu0 %v140
    %171 = vmatprep.subr.mxu0 0.0
    %172 = vmatpush1.msra.mxu0 0.0
    %173 = vmatprep.subr.mxu0 0.0
    %174 = vmatpush1.msra.mxu0 0.0
    %175 = vmatprep.subr.mxu0 0.0
    %176 = vmatpush1.msra.mxu0 0.0
    %177 = vmatprep.subr.mxu0 0.0
    %178 = vmatpush1.msra.mxu0 0.0
    %179 = vmatprep.subr.mxu0 0.0
    %180 = vmatpush1.msra.mxu0 0.0
    %181 = vmatprep.subr.mxu0 0.0
    %182 = vmatpush1.msra.mxu0 0.0
    %183 = vmatprep.subr.mxu0 0.0
    %184 = vmatpush1.msra.mxu0 0.0
    %185 = vmatprep.subr.mxu0 0.0
    %186 = vmatpush1.msra.mxu0 0.0
    %187 = vmatprep.subr.mxu0 0.0
    %188 = vmatpush1.msra.mxu0 0.0
    %189 = vmatprep.subr.mxu0 0.0
    %190 = vmatpush1.msra.mxu0 0.0
    %191 = vmatprep.subr.mxu0 0.0
    %192 = vmatpush1.msra.mxu0 0.0
    %193 = vmatprep.subr.mxu0 0.0
    %194 = vmatpush1.msra.mxu0 0.0
    %195 = vmatprep.subr.mxu0 0.0
    %196 = vmatpush1.msra.mxu0 0.0
    %197 = vmatprep.subr.mxu0 0.0
    %198 = vmatpush1.msra.mxu0 0.0
    %199 = vmatprep.subr.mxu0 0.0
    %200 = vmatpush1.msra.mxu0 0.0
    %201 = vmatprep.subr.mxu0 0.0
    %202 = vmatpush1.msra.mxu0 0.0
    %203 = vmatprep.subr.mxu0 0.0
    %204 = vmatpush1.msra.mxu0 0.0
    %205 = vmatprep.subr.mxu0 0.0
    %206 = vmatpush1.msra.mxu0 0.0
    %207 = vmatprep.subr.mxu0 0.0
    %208 = vmatpush1.msra.mxu0 0.0
    %209 = vmatprep.subr.mxu0 0.0
    %210 = vmatpush1.msra.mxu0 0.0
    %211 = vmatprep.subr.mxu0 0.0
    %212 = vmatpush1.msra.mxu0 0.0
    %213 = vmatprep.subr.mxu0 0.0
    %214 = vmatpush1.msra.mxu0 0.0
    %215 = vmatprep.subr.mxu0 0.0
    %216 = vmatpush1.msra.mxu0 0.0
    %217 = vmatprep.subr.mxu0 0.0
    %218 = vmatpush1.msra.mxu0 0.0
    %219 = vmatprep.mubr.f32.mxu0 0.0
    %220 = vmatmul.mubr.f32.gmra.mrb[0].mxu0 %v150
    %v221 = vpop.f32.mrb[0].mxu0
    %v222 = vadd.f32 %v146, %v221
    %v223 = vpop.f32.mrb[0].mxu0
    %224 = vmatprep.mubr.f32.mxu0 0.0
    %225 = vmatmul.mubr.f32.gmra.mrb[0].mxu0 %v153
    %v226 = vpop.f32.mrb[0].mxu0
    %v227 = vadd.f32 %v146, %v226
    %v228 = vpop.f32.mrb[0].mxu0
    %229 = vdwg.mxu0
    %v230 = vmax.f32 %v222, 0.0
    %v231 = vmax.f32 %v227, 0.0
    %232 = vst [vmem:[#allocation5] sm:$0xff] %v230
    %233 = vst [vmem:[#allocation5 + $0x8] sm:$0xff] %v231
    // Predicated region
    $region26: #{radar_encoder_forward.1} parent=1 // pred_check
      _
    $region27: #{radar_encoder_forward.1} parent=1 // pred_check_branch
      %235 = sbr.rel (0) target = $region29
    $region28: #{radar_encoder_forward.1} parent=1 // pred_region
      %s237 = ssub.s32 256, 256
      %238 = vsyncadd [#allocation4], %s237
      %s239 = sshll.u32 [#allocation5], 4
      %s240 = int_to_ptr.vmem [resolvable:$true] %s239
      %245 = dma.vmem_to_hbm [thread:$0]  %s240, 256, %s5, [#allocation4], 128, 128, 8
    $region29: #{radar_encoder_forward.1} parent=1 // pred_fallthru
      _
    // Predicated region
    $region30: #{radar_encoder_forward.1} parent=1 // pred_check
      _
    $region31: #{radar_encoder_forward.1} parent=1 // pred_check_branch
      %247 = sbr.rel (0) target = $region33
    $region32: #{radar_encoder_forward.1} parent=1 // pred_region
      %248 = dma.done [#allocation4], 256
    $region33: #{radar_encoder_forward.1} parent=1 // pred_fallthru
      _
    %249 = vsyncpa [#allocation3], 1
    %250 = vsyncpa [#allocation4], 1

</llo_original>
